<compile_context>
chip_gen: v6e
topology: v6e:2x2x1
jax: 0.10.0
libtpu: 0.0.40
codegen_flags: <defaults>
</compile_context>

<pallas_src>
import functools
import math

import jax
import jax.numpy as jnp
from jax.experimental import pallas as pl
from jax.experimental.pallas import tpu as pltpu


# ----------------------------- kernels -------------------------------------


def _qkv_proj_kernel(x_ref, wqkv_ref, bqkv_ref, q_ref, k_ref, v_ref):
    """Fused QKV projection for one (rows, E) tile of one batch element."""
    E = q_ref.shape[-1]
    x = x_ref[...].astype(jnp.bfloat16)            # x is read exactly once -> cast in-kernel
    qkv = jnp.dot(x, wqkv_ref[...], preferred_element_type=jnp.float32) + bqkv_ref[...]
    qkv = qkv.astype(jnp.bfloat16)
    q_ref[...] = qkv[:, :E]        # Q columns already carry the 1/sqrt(Dh) scale (wrapper)
    k_ref[...] = qkv[:, E:2 * E]
    v_ref[...] = qkv[:, 2 * E:]


def _attn_ff_kernel(x_ref, q_ref, k_ref, v_ref,
                    woh_ref, bo_ref, g1_ref, be1_ref,
                    w1_ref, bf1_ref, w2_ref, bf2_ref,
                    g2_ref, be2_ref, o_ref, *, eps):
    """Attention + out-proj + residual/LN + FF + residual/LN for one (tq, E) query tile."""
    x = x_ref[...].astype(jnp.float32)             # (tq, E)    residual path stays f32
    q = q_ref[...]                                 # (H, tq, Dh) bf16, pre-scaled
    k = k_ref[...]                                 # (H, S,  Dh) bf16
    v = v_ref[...]                                 # (H, S,  Dh) bf16

    # --- attention scores for all heads in one batched MXU contraction ---
    s = jnp.einsum('hqd,hkd->hqk', q, k, preferred_element_type=jnp.float32)   # (H, tq, S)
    s = s - jnp.max(s, axis=-1, keepdims=True)
    p = jnp.exp(s)
    # EUP approximate reciprocal (free slot); use an exact divide if tighter accuracy needed.
    p = p * pl.reciprocal(jnp.sum(p, axis=-1, keepdims=True), approx=True)
    ctx = jnp.einsum('hqk,hkd->hqd', p.astype(jnp.bfloat16), v,
                     preferred_element_type=jnp.float32)                        # (H, tq, Dh)

    # --- output projection: per-head (Dh, E) blocks of W_o, reduced over heads into one
    #     full-width lane-dense (tq, E) value (no masked per-head stores, no scratch) ---
    attn = jnp.einsum('hqd,hde->hqe', ctx.astype(jnp.bfloat16), woh_ref[...],
                      preferred_element_type=jnp.float32).sum(axis=0) + bo_ref[...]

    def layer_norm(h, g, b):
        mu = jnp.mean(h, axis=-1, keepdims=True)
        c = h - mu
        var = jnp.mean(c * c, axis=-1, keepdims=True)
        return c * jax.lax.rsqrt(var + eps) * g + b

    # residual + norm1   (dropout = identity in eval mode)
    h1 = layer_norm(x + attn, g1_ref[...], be1_ref[...])

    # feed-forward: Linear -> ReLU -> Linear (bf16 MXU operands, f32 accumulation)
    ff = jnp.dot(h1.astype(jnp.bfloat16), w1_ref[...],
                 preferred_element_type=jnp.float32) + bf1_ref[...]
    ff = jnp.maximum(ff, 0.0)
    ff = jnp.dot(ff.astype(jnp.bfloat16), w2_ref[...],
                 preferred_element_type=jnp.float32) + bf2_ref[...]

    # residual + norm2, single full-width (tq, E) store
    o_ref[...] = layer_norm(h1 + ff, g2_ref[...], be2_ref[...]).astype(o_ref.dtype)


# ----------------------------- wrapper --------------------------------------


def _const_spec(shape):
    """Grid-invariant operand (weights / biases / LN params): constant index map,
    single-buffered when the installed Pallas supports pipeline_mode (frees VMEM; v7x)."""
    index_map = lambda *_: (0,) * len(shape)
    if hasattr(pl, "Buffered"):
        try:
            return pl.BlockSpec(shape, index_map, pipeline_mode=pl.Buffered(1))
        except TypeError:   # older Pallas without the pipeline_mode kwarg
            pass
    return pl.BlockSpec(shape, index_map)


def transformer_block(x_sbe, params, *, num_heads, eps=1e-5, q_block=None):
    """x_sbe: (seq, batch, embed) — the PyTorch nn.MultiheadAttention default layout."""
    S, B, E = x_sbe.shape
    (wq, wk, wv, bq, bk, bv, wo, bo,
     g1, be1, w1, bf1, w2, bf2, g2, be2) = params
    F = w1.shape[1]
    assert E % num_heads == 0, "embed_dim must be divisible by num_heads"
    Dh = E // num_heads
    scale = 1.0 / math.sqrt(Dh)

    if q_block is None:
        q_block = min(S, 256)          # 256-aligned feeds the v6e/v7x 256x256 MXU
    q_block = max(1, min(q_block, S))
    # TODO(synk): row-mask edge tiles instead of requiring an exact split.
    assert S % q_block == 0, "seq_len must be divisible by q_block (pad or pick a divisor)"
    n_q = S // q_block

    # ---- one-time wrapper-side layout / weight prep (no per-grid-step work) ----
    x_bse = jnp.transpose(x_sbe, (1, 0, 2))                                     # (B, S, E)
    wqkv = jnp.concatenate([wq * scale, wk, wv], axis=1).astype(jnp.bfloat16)   # (E, 3E)
    bqkv = jnp.concatenate([bq * scale, bk, bv], axis=1)                        # (1, 3E) f32
    wo_heads = wo.reshape(num_heads, Dh, E).astype(jnp.bfloat16)                # (H, Dh, E)
    w1_b = w1.astype(jnp.bfloat16)
    w2_b = w2.astype(jnp.bfloat16)

    # ---- kernel 1: fused QKV projection, computed once per token ----
    q_bse, k_bse, v_bse = pl.pallas_call(
        _qkv_proj_kernel,
        out_shape=[jax.ShapeDtypeStruct((B, S, E), jnp.bfloat16)] * 3,
        grid_spec=pltpu.PrefetchScalarGridSpec(
            num_scalar_prefetch=0,
            grid=(B, n_q),
            in_specs=[
                pl.BlockSpec((None, q_block, E), lambda b, i: (b, i, 0)),   # x tile
                _const_spec((E, 3 * E)),                                    # W_qkv (bf16)
                _const_spec((1, 3 * E)),                                    # b_qkv (f32)
            ],
            out_specs=[pl.BlockSpec((None, q_block, E), lambda b, i: (b, i, 0))] * 3,
        ),
        compiler_params=pltpu.CompilerParams(
            dimension_semantics=("parallel", "parallel")),
    )(x_bse, wqkv, bqkv)

    # Head-major views for the batched-over-heads contractions in kernel 2.
    # TODO(synk): at production sizes fold this transpose into the kernel indexing.
    def to_heads(t):                                                   # (B,S,E) -> (B,H,S,Dh)
        return jnp.transpose(t.reshape(B, S, num_heads, Dh), (0, 2, 1, 3))
    q_h, k_h, v_h = to_heads(q_bse), to_heads(k_bse), to_heads(v_bse)

    # ---- VMEM budget derived from actual block sizes (capped for v7x's 64 MiB/TC) ----
    stream_bytes = 2 * (                         # double-buffered streaming blocks
        q_block * E * 4                          # x tile (f32)
        + num_heads * q_block * Dh * 2           # Q tile (bf16)
        + 2 * num_heads * S * Dh * 2             # K + V per-batch resident (bf16)
        + q_block * E * 4)                       # out tile (f32)
    weight_bytes = (num_heads * Dh * E + E * F + F * E) * 2 + (6 * E + F) * 4
    vmem_limit = int(max(16 << 20,
                         min(64 << 20, 2 * (stream_bytes + 2 * weight_bytes) + (8 << 20))))

    out_bse = pl.pallas_call(
        functools.partial(_attn_ff_kernel, eps=eps),
        out_shape=jax.ShapeDtypeStruct((B, S, E), x_sbe.dtype),
        grid_spec=pltpu.PrefetchScalarGridSpec(
            num_scalar_prefetch=0,
            grid=(B, n_q),                                  # both axes fully independent
            in_specs=[
                pl.BlockSpec((None, q_block, E), lambda b, i: (b, i, 0)),                 # x tile
                pl.BlockSpec((None, num_heads, q_block, Dh), lambda b, i: (b, 0, i, 0)),  # Q tile
                pl.BlockSpec((None, num_heads, S, Dh), lambda b, i: (b, 0, 0, 0)),        # K (per batch)
                pl.BlockSpec((None, num_heads, S, Dh), lambda b, i: (b, 0, 0, 0)),        # V (per batch)
                _const_spec((num_heads, Dh, E)),                   # W_o head-major (bf16)
                _const_spec((1, E)),                               # b_o
                _const_spec((1, E)), _const_spec((1, E)),          # gamma1, beta1
                _const_spec((E, F)), _const_spec((1, F)),          # W_ff1 (bf16), b_ff1
                _const_spec((F, E)), _const_spec((1, E)),          # W_ff2 (bf16), b_ff2
                _const_spec((1, E)), _const_spec((1, E)),          # gamma2, beta2
            ],
            out_specs=pl.BlockSpec((None, q_block, E), lambda b, i: (b, i, 0)),
        ),
        compiler_params=pltpu.CompilerParams(
            dimension_semantics=("parallel", "parallel"),
            vmem_limit_bytes=vmem_limit,
        ),
    )(x_bse, q_h, k_h, v_h,
      wo_heads, bo, g1, be1, w1_b, bf1, w2_b, bf2, g2, be2)

    return jnp.transpose(out_bse, (1, 0, 2))                           # back to (S, B, E)


# ----------------------------- params / reference ---------------------------


def init_params(key, embed_dim, num_heads, ff_hidden_dim):
    E, F = embed_dim, ff_hidden_dim
    ks = jax.random.split(key, 6)

    # nn.MultiheadAttention: in_proj_weight ~ xavier_uniform, biases = 0.
    a_in = math.sqrt(6.0 / (3 * E + E))
    in_proj_w = jax.random.uniform(ks[0], (3 * E, E), jnp.float32, -a_in, a_in)
    wq = in_proj_w[:E].T
    wk = in_proj_w[E:2 * E].T
    wv = in_proj_w[2 * E:].T
    bq = jnp.zeros((1, E), jnp.float32)
    bk = jnp.zeros((1, E), jnp.float32)
    bv = jnp.zeros((1, E), jnp.float32)

    # out_proj: Linear(E, E), bias = 0.
    a_o = math.sqrt(1.0 / E)
    wo = jax.random.uniform(ks[1], (E, E), jnp.float32, -a_o, a_o).T
    bo = jnp.zeros((1, E), jnp.float32)

    # LayerNorm params (defaults: weight=1, bias=0).
    g1 = jnp.ones((1, E), jnp.float32)
    be1 = jnp.zeros((1, E), jnp.float32)
    g2 = jnp.ones((1, E), jnp.float32)
    be2 = jnp.zeros((1, E), jnp.float32)

    # FF: weights ~ N(0, 0.01) per init_weights(); biases default uniform(-1/sqrt(fan_in), ...).
    w1 = (0.01 * jax.random.normal(ks[2], (F, E), jnp.float32)).T     # (E, F)
    bf1 = jax.random.uniform(ks[3], (1, F), jnp.float32,
                             -1.0 / math.sqrt(E), 1.0 / math.sqrt(E))
    w2 = (0.01 * jax.random.normal(ks[4], (E, F), jnp.float32)).T     # (F, E)
    bf2 = jax.random.uniform(ks[5], (1, E), jnp.float32,
                             -1.0 / math.sqrt(F), 1.0 / math.sqrt(F))

    return (wq, wk, wv, bq, bk, bv, wo, bo, g1, be1, w1, bf1, w2, bf2, g2, be2)


def _reference(x_sbe, params, num_heads, eps=1e-5):
    (wq, wk, wv, bq, bk, bv, wo, bo, g1, be1, w1, bf1, w2, bf2, g2, be2) = params
    S, B, E = x_sbe.shape
    Dh = E // num_heads
    scale = 1.0 / math.sqrt(Dh)

    def ln(h, g, b):
        mu = jnp.mean(h, axis=-1, keepdims=True)
        var = jnp.mean((h - mu) ** 2, axis=-1, keepdims=True)
        return (h - mu) * jax.lax.rsqrt(var + eps) * g + b

    outs = []
    for b_i in range(B):
        x = x_sbe[:, b_i, :]
        q, k, v = x @ wq + bq, x @ wk + bk, x @ wv + bv
        heads = []
        for h in range(num_heads):
            sl = slice(h * Dh, (h + 1) * Dh)
            s = (q[:, sl] @ k[:, sl].T) * scale
            p = jax.nn.softmax(s, axis=-1)
            heads.append(p @ v[:, sl])
        attn = jnp.concatenate(heads, axis=-1) @ wo + bo
        h1 = ln(x + attn, g1, be1)
        ff = jnp.maximum(h1 @ w1 + bf1, 0.0) @ w2 + bf2
        outs.append(ln(h1 + ff, g2, be2))
    return jnp.stack(outs, axis=1)


if __name__ == "__main__":
    embed_dim, num_heads, ff_hidden_dim = 32, 4, 64
    seq_len, batch = 16, 2

    key = jax.random.PRNGKey(0)
    k_x, k_p = jax.random.split(key)
    x = jax.random.normal(k_x, (seq_len, batch, embed_dim), jnp.float32)
    params = init_params(k_p, embed_dim, num_heads, ff_hidden_dim)

    # q_block=8 -> grid (batch=2, q_tiles=2): 4 independent "parallel" steps, so both
    # TensorCores of a v7x chip get work; K/V are projected once and reused per batch.
    out = transformer_block(x, params, num_heads=num_heads, q_block=8)
    out = jax.block_until_ready(out)

    ref = _reference(x, params, num_heads)
    assert out.shape == (seq_len, batch, embed_dim)
    max_err = float(jnp.max(jnp.abs(out - ref)))
    # bf16 MXU ingestion + EUP approximate reciprocal => relaxed tolerance vs f32 reference.
    assert jnp.allclose(out, ref, atol=5e-2, rtol=5e-2), f"mismatch vs reference: {max_err}"

    print("KERNEL_OK")
</pallas_src>

<mosaic_0001>
module attributes {stable_mosaic.version = 11 : i64} {
  func.func @_qkv_proj_kernel(%arg0: i32, %arg1: i32, %arg2: memref<1x8x32xf32, #tpu.memory_space<vmem>>, %arg3: memref<32x96xbf16, #tpu.memory_space<vmem>>, %arg4: memref<1x96xf32, #tpu.memory_space<vmem>>, %arg5: memref<1x8x32xbf16, #tpu.memory_space<vmem>>, %arg6: memref<1x8x32xbf16, #tpu.memory_space<vmem>>, %arg7: memref<1x8x32xbf16, #tpu.memory_space<vmem>>) attributes {dimension_semantics = [#tpu.dimension_semantics<parallel>, #tpu.dimension_semantics<parallel>], iteration_bounds = array<i64: 2, 2>, scalar_prefetch = 0 : i64, scratch_operands = 0 : i64, tpu.core_type = #tpu.core_type<tc>, window_params = [{transform_indices = @transform_0, window_bounds = array<i64: 1, 8, 32>}, {pipeline_mode = #tpu.pipeline_mode<synchronous>, transform_indices = @transform_1, window_bounds = array<i64: 32, 96>}, {pipeline_mode = #tpu.pipeline_mode<synchronous>, transform_indices = @transform_2, window_bounds = array<i64: 1, 96>}, {transform_indices = @transform_3, window_bounds = array<i64: 1, 8, 32>}, {transform_indices = @transform_4, window_bounds = array<i64: 1, 8, 32>}, {transform_indices = @transform_5, window_bounds = array<i64: 1, 8, 32>}]} {
    %c0 = arith.constant 0 : index
    %c0_0 = arith.constant 0 : index
    %c0_1 = arith.constant 0 : index
    %0 = vector.load %arg2[%c0, %c0_0, %c0_1] : memref<1x8x32xf32, #tpu.memory_space<vmem>>, vector<1x8x32xf32>
    %1 = vector.shape_cast %0 : vector<1x8x32xf32> to vector<8x32xf32>
    %2 = arith.truncf %1 : vector<8x32xf32> to vector<8x32xbf16>
    %c0_2 = arith.constant 0 : index
    %c0_3 = arith.constant 0 : index
    %3 = vector.load %arg3[%c0_2, %c0_3] : memref<32x96xbf16, #tpu.memory_space<vmem>>, vector<32x96xbf16>
    %cst = arith.constant dense<0.000000e+00> : vector<8x96xf32>
    %4 = tpu.matmul %2, %3, %cst {dimension_numbers = #tpu.dot_dimension_numbers<[1], [0], [0], [1], [0, 0, 1, 1], [], []>} : vector<8x32xbf16>, vector<32x96xbf16>, vector<8x96xf32> -> vector<8x96xf32>
    %c0_4 = arith.constant 0 : index
    %c0_5 = arith.constant 0 : index
    %5 = vector.load %arg4[%c0_4, %c0_5] : memref<1x96xf32, #tpu.memory_space<vmem>>, vector<1x96xf32>
    %6 = vector.broadcast %5 : vector<1x96xf32> to vector<8x96xf32>
    %7 = arith.addf %4, %6 : vector<8x96xf32>
    %8 = arith.truncf %7 : vector<8x96xf32> to vector<8x96xbf16>
    %9 = vector.extract_strided_slice %8 {offsets = [0, 0], sizes = [8, 32], strides = [1, 1]} : vector<8x96xbf16> to vector<8x32xbf16>
    %c0_6 = arith.constant 0 : index
    %c0_7 = arith.constant 0 : index
    %c0_8 = arith.constant 0 : index
    %10 = vector.load %arg5[%c0_6, %c0_7, %c0_8] : memref<1x8x32xbf16, #tpu.memory_space<vmem>>, vector<1x8x32xbf16>
    %11 = vector.shape_cast %10 : vector<1x8x32xbf16> to vector<8x32xbf16>
    %12 = vector.shape_cast %9 : vector<8x32xbf16> to vector<1x8x32xbf16>
    tpu.vector_store %arg5[%c0_6, %c0_7, %c0_8], %12 {strides = array<i32>} : memref<1x8x32xbf16, #tpu.memory_space<vmem>>, vector<1x8x32xbf16>,
    %13 = vector.extract_strided_slice %8 {offsets = [0, 32], sizes = [8, 32], strides = [1, 1]} : vector<8x96xbf16> to vector<8x32xbf16>
    %c0_9 = arith.constant 0 : index
    %c0_10 = arith.constant 0 : index
    %c0_11 = arith.constant 0 : index
    %14 = vector.load %arg6[%c0_9, %c0_10, %c0_11] : memref<1x8x32xbf16, #tpu.memory_space<vmem>>, vector<1x8x32xbf16>
    %15 = vector.shape_cast %14 : vector<1x8x32xbf16> to vector<8x32xbf16>
    %16 = vector.shape_cast %13 : vector<8x32xbf16> to vector<1x8x32xbf16>
    tpu.vector_store %arg6[%c0_9, %c0_10, %c0_11], %16 {strides = array<i32>} : memref<1x8x32xbf16, #tpu.memory_space<vmem>>, vector<1x8x32xbf16>,
    %17 = vector.extract_strided_slice %8 {offsets = [0, 64], sizes = [8, 32], strides = [1, 1]} : vector<8x96xbf16> to vector<8x32xbf16>
    %c0_12 = arith.constant 0 : index
    %c0_13 = arith.constant 0 : index
    %c0_14 = arith.constant 0 : index
    %18 = vector.load %arg7[%c0_12, %c0_13, %c0_14] : memref<1x8x32xbf16, #tpu.memory_space<vmem>>, vector<1x8x32xbf16>
    %19 = vector.shape_cast %18 : vector<1x8x32xbf16> to vector<8x32xbf16>
    %20 = vector.shape_cast %17 : vector<8x32xbf16> to vector<1x8x32xbf16>
    tpu.vector_store %arg7[%c0_12, %c0_13, %c0_14], %20 {strides = array<i32>} : memref<1x8x32xbf16, #tpu.memory_space<vmem>>, vector<1x8x32xbf16>,
    return
  }
  func.func @transform_0(%arg0: i32, %arg1: i32) -> (i32, i32, i32) {
    %c0_i32 = arith.constant 0 : i32
    %c0_i32_0 = arith.constant 0 : i32
    return %arg0, %arg1, %c0_i32 : i32, i32, i32
  }
  func.func @transform_1(%arg0: i32, %arg1: i32) -> (i32, i32) {
    %c0_i32 = arith.constant 0 : i32
    %c0_i32_0 = arith.constant 0 : i32
    %c0_i32_1 = arith.constant 0 : i32
    return %c0_i32, %c0_i32_0 : i32, i32
  }
  func.func @transform_2(%arg0: i32, %arg1: i32) -> (i32, i32) {
    %c0_i32 = arith.constant 0 : i32
    %c0_i32_0 = arith.constant 0 : i32
    %c0_i32_1 = arith.constant 0 : i32
    return %c0_i32, %c0_i32_0 : i32, i32
  }
  func.func @transform_3(%arg0: i32, %arg1: i32) -> (i32, i32, i32) {
    %c0_i32 = arith.constant 0 : i32
    %c0_i32_0 = arith.constant 0 : i32
    return %arg0, %arg1, %c0_i32 : i32, i32, i32
  }
  func.func @transform_4(%arg0: i32, %arg1: i32) -> (i32, i32, i32) {
    %c0_i32 = arith.constant 0 : i32
    %c0_i32_0 = arith.constant 0 : i32
    return %arg0, %arg1, %c0_i32 : i32, i32, i32
  }
  func.func @transform_5(%arg0: i32, %arg1: i32) -> (i32, i32, i32) {
    %c0_i32 = arith.constant 0 : i32
    %c0_i32_0 = arith.constant 0 : i32
    return %arg0, %arg1, %c0_i32 : i32, i32, i32
  }
}

</mosaic_0001>

<llo_original>
// kernel: tpu_custom_call.1
$region0: #{tpu_custom_call.1}
  #allocation0 [shape = 'u32[]', space=smem, size = 0x4, offset = 0x4, fixed_abs, tag = 'smem constant byte address 0x4 - core index']
  #allocation1 [shape = 'u32[144,128]{1,0:T(1,128)}', space=vmem, size = 0x12000, scoped, tag = 'internal scratch']
  %s0 = inlined_call_operand.hbm [shape: f32[2,16,32], index: 0, kind: input, shape index: {}]
  %s1 = inlined_call_operand.hbm [shape: bf16[32,96], index: 1, kind: input, shape index: {}]
  %s2 = inlined_call_operand.vmem [shape: f32[1,96], index: 2, kind: input, shape index: {}]
  %s3 = inlined_call_operand.hbm [shape: bf16[2,16,32], index: 3, kind: output, shape index: {0}]
  %s4 = inlined_call_operand.hbm [shape: bf16[2,16,32], index: 4, kind: output, shape index: {1}]
  %s5 = inlined_call_operand.hbm [shape: bf16[2,16,32], index: 5, kind: output, shape index: {2}]
  %6 = xla_tuple %s3, %s4, %s5
  %s7 = sld [smem:[#allocation0]]
  $region69: #{tpu_custom_call.1} parent=0
    _
  %s9 = ssub.s32 1, %s7
  %s10 = scalar_select 0, %s9, %s7
  $region1: #{tpu_custom_call.1} parent=0
    #allocation2 [shape = 'u8[8192]{0}', space=vmem, size = 0x2000, scoped, tag = 'input window, operand 0']
    #allocation3 [shape = 's32[2]{0}', space=sflag, size = 0x8, scoped, tag = 'scoped memory for tpu_custom_call.1']
    #allocation4 [shape = 's32[2]{0}', space=sflag, size = 0x8, scoped, tag = 'scoped memory for tpu_custom_call.1']
    #allocation5 [shape = 'u8[8192]{0}', space=vmem, size = 0x2000, scoped, tag = 'input window, operand 1, single buffered']
    #allocation6 [shape = 's32[1]{0}', space=sflag, size = 0x4, scoped, tag = 'scoped memory for tpu_custom_call.1']
    #allocation7 [shape = 'u8[4096]{0}', space=vmem, size = 0x1000, scoped, tag = 'output window, operand 0']
    #allocation8 [shape = 'u8[4096]{0}', space=vmem, size = 0x1000, scoped, tag = 'output window, operand 1']
    #allocation9 [shape = 's32[2]{0}', space=sflag, size = 0x8, scoped, tag = 'scoped memory for tpu_custom_call.1']
    #allocation10 [shape = 'u8[4096]{0}', space=vmem, size = 0x1000, scoped, tag = 'output window, operand 2']
    %11 = vsyncpa [#allocation3], 0
    %s12 = scalar_lea.sflag [#allocation3], 1
    %13 = vsyncpa %s12, 0
    %14 = vsyncpa [#allocation6], 0
    %15 = vsyncpa [#allocation4], 0
    %s16 = scalar_lea.sflag [#allocation4], 1
    %17 = vsyncpa %s16, 0
    %18 = vsyncpa [#allocation9], 0
    %s19 = scalar_lea.sflag [#allocation9], 1
    %20 = vsyncpa %s19, 0
    loop: start=0, step=1, limit=6
    $region2: #{tpu_custom_call.1} parent=1 // loop_pre_header
      _
    $region3: #{tpu_custom_call.1} parent=1 // loop_header
      %s22 = sphi 0, %s26
      %p23 = scmp.ge.s32.totalorder %s22, 6
      %s29 = sphi 0, %s41
      %s30 = sphi 0, %s37
      %s31 = sphi 0, %s29
      %s32 = sphi 0, %s30
      %s33 = sphi 0, %s31
      %s34 = sphi 0, %s32
      %s46 = sphi 0, %s48
      %s49 = sphi 0, %s46
      %s50 = sphi 0, %s49
      %s66 = sphi 0, %s50
      %s70 = sphi 0, %s70
      %s72 = sphi 0, %s70
      %s73 = sphi 0, %s72
      %s87 = sphi 0, %s73
      %s91 = sphi 0, %s91
      %s93 = sphi 0, %s91
      %s94 = sphi 0, %s93
      %s108 = sphi 0, %s94
      %s116 = sphi 0, %s118
      %s119 = sphi 0, %s116
      %s120 = sphi 0, %s119
      %s136 = sphi 0, %s120
      %s144 = sphi 0, %s146
      %s147 = sphi 0, %s144
      %s148 = sphi 0, %s147
      %s164 = sphi 0, %s148
      %s172 = sphi 0, %s174
      %s175 = sphi 0, %s172
      %s176 = sphi 0, %s175
      %s192 = sphi 0, %s176
    $region4: #{tpu_custom_call.1} parent=1 // loop_header_branch
      %25 = sbr.rel (%p23) target = $region8
    $region5: #{tpu_custom_call.1} parent=1 // loop_body
      %s27 = ssub.s32 %s22, 1
      %s28 = ssub.s32 %s22, 2
      %s35 = sadd.s32 1, %s30
      %p36 = scmp.ge.s32.totalorder %s35, 2
      %s37 = scalar_select %p36, 0, %s35
      %s38 = sadd.s32 1, %s29
      %s39 = scalar_select %p36, %s38, %s29
      %p40 = scmp.ge.s32.totalorder %s39, 2
      %s41 = scalar_select %p40, 0, %s39
      %s42 = ssub.s32 %s29, %s41
      %s43 = ssub.s32 %s30, %s37
      %s44 = sor.u32 %s42, %s43
      %p45 = scmp.eq.s32.totalorder %s44, 0
      %s47 = sadd.s32 %s46, 1
      %s48 = scalar_select %p45, %s46, %s47
      %p51 = pneg %p45
      %p52 = scmp.eq.s32.totalorder %s22, 3
      %p53 = por %p51, %p52
      %p54 = scmp.ne.s32.totalorder %s46, %s49
      %p55 = scmp.eq.s32.totalorder %s22, 0
      %p56 = por %p54, %p55
      %p57 = scmp.ne.s32.totalorder %s46, %s49
      %p58 = scmp.eq.s32.totalorder %s27, 3
      %p59 = por %p57, %p58
      %p60 = scmp.ne.s32.totalorder %s49, %s50
      %p61 = scmp.eq.s32.totalorder %s27, 0
      %p62 = por %p60, %p61
      %p63 = scmp.ne.s32.totalorder %s49, %s50
      %p64 = scmp.eq.s32.totalorder %s28, 3
      %p65 = por %p63, %p64
      %p67 = scmp.ne.s32.totalorder %s50, %s66
      %p68 = scmp.eq.s32.totalorder %s28, 0
      %p69 = por %p67, %p68
      %s71 = sadd.s32 %s70, 1
      %p74 = scmp.eq.s32.totalorder %s22, 3
      %p75 = scmp.ne.s32.totalorder %s70, %s72
      %p76 = scmp.eq.s32.totalorder %s22, 0
      %p77 = por %p75, %p76
      %p78 = scmp.ne.s32.totalorder %s70, %s72
      %p79 = scmp.eq.s32.totalorder %s27, 3
      %p80 = por %p78, %p79
      %p81 = scmp.ne.s32.totalorder %s72, %s73
      %p82 = scmp.eq.s32.totalorder %s27, 0
      %p83 = por %p81, %p82
      %p84 = scmp.ne.s32.totalorder %s72, %s73
      %p85 = scmp.eq.s32.totalorder %s28, 3
      %p86 = por %p84, %p85
      %p88 = scmp.ne.s32.totalorder %s73, %s87
      %p89 = scmp.eq.s32.totalorder %s28, 0
      %p90 = por %p88, %p89
      %s92 = sadd.s32 %s91, 1
      %p95 = scmp.eq.s32.totalorder %s22, 3
      %p96 = scmp.ne.s32.totalorder %s91, %s93
      %p97 = scmp.eq.s32.totalorder %s22, 0
      %p98 = por %p96, %p97
      %p99 = scmp.ne.s32.totalorder %s91, %s93
      %p100 = scmp.eq.s32.totalorder %s27, 3
      %p101 = por %p99, %p100
      %p102 = scmp.ne.s32.totalorder %s93, %s94
      %p103 = scmp.eq.s32.totalorder %s27, 0
      %p104 = por %p102, %p103
      %p105 = scmp.ne.s32.totalorder %s93, %s94
      %p106 = scmp.eq.s32.totalorder %s28, 3
      %p107 = por %p105, %p106
      %p109 = scmp.ne.s32.totalorder %s94, %s108
      %p110 = scmp.eq.s32.totalorder %s28, 0
      %p111 = por %p109, %p110
      %s112 = ssub.s32 %s29, %s41
      %s113 = ssub.s32 %s30, %s37
      %s114 = sor.u32 %s112, %s113
      %p115 = scmp.eq.s32.totalorder %s114, 0
      %s117 = sadd.s32 %s116, 1
      %s118 = scalar_select %p115, %s116, %s117
      %p121 = pneg %p115
      %p122 = scmp.eq.s32.totalorder %s22, 3
      %p123 = por %p121, %p122
      %p124 = scmp.ne.s32.totalorder %s116, %s119
      %p125 = scmp.eq.s32.totalorder %s22, 0
      %p126 = por %p124, %p125
      %p127 = scmp.ne.s32.totalorder %s116, %s119
      %p128 = scmp.eq.s32.totalorder %s27, 3
      %p129 = por %p127, %p128
      %p130 = scmp.ne.s32.totalorder %s119, %s120
      %p131 = scmp.eq.s32.totalorder %s27, 0
      %p132 = por %p130, %p131
      %p133 = scmp.ne.s32.totalorder %s119, %s120
      %p134 = scmp.eq.s32.totalorder %s28, 3
      %p135 = por %p133, %p134
      %p137 = scmp.ne.s32.totalorder %s120, %s136
      %p138 = scmp.eq.s32.totalorder %s28, 0
      %p139 = por %p137, %p138
      %s140 = ssub.s32 %s29, %s41
      %s141 = ssub.s32 %s30, %s37
      %s142 = sor.u32 %s140, %s141
      %p143 = scmp.eq.s32.totalorder %s142, 0
      %s145 = sadd.s32 %s144, 1
      %s146 = scalar_select %p143, %s144, %s145
      %p149 = pneg %p143
      %p150 = scmp.eq.s32.totalorder %s22, 3
      %p151 = por %p149, %p150
      %p152 = scmp.ne.s32.totalorder %s144, %s147
      %p153 = scmp.eq.s32.totalorder %s22, 0
      %p154 = por %p152, %p153
      %p155 = scmp.ne.s32.totalorder %s144, %s147
      %p156 = scmp.eq.s32.totalorder %s27, 3
      %p157 = por %p155, %p156
      %p158 = scmp.ne.s32.totalorder %s147, %s148
      %p159 = scmp.eq.s32.totalorder %s27, 0
      %p160 = por %p158, %p159
      %p161 = scmp.ne.s32.totalorder %s147, %s148
      %p162 = scmp.eq.s32.totalorder %s28, 3
      %p163 = por %p161, %p162
      %p165 = scmp.ne.s32.totalorder %s148, %s164
      %p166 = scmp.eq.s32.totalorder %s28, 0
      %p167 = por %p165, %p166
      %s168 = ssub.s32 %s29, %s41
      %s169 = ssub.s32 %s30, %s37
      %s170 = sor.u32 %s168, %s169
      %p171 = scmp.eq.s32.totalorder %s170, 0
      %s173 = sadd.s32 %s172, 1
      %s174 = scalar_select %p171, %s172, %s173
      %p177 = pneg %p171
      %p178 = scmp.eq.s32.totalorder %s22, 3
      %p179 = por %p177, %p178
      %p180 = scmp.ne.s32.totalorder %s172, %s175
      %p181 = scmp.eq.s32.totalorder %s22, 0
      %p182 = por %p180, %p181
      %p183 = scmp.ne.s32.totalorder %s172, %s175
      %p184 = scmp.eq.s32.totalorder %s27, 3
      %p185 = por %p183, %p184
      %p186 = scmp.ne.s32.totalorder %s175, %s176
      %p187 = scmp.eq.s32.totalorder %s27, 0
      %p188 = por %p186, %p187
      %p189 = scmp.ne.s32.totalorder %s175, %s176
      %p190 = scmp.eq.s32.totalorder %s28, 3
      %p191 = por %p189, %p190
      %p193 = scmp.ne.s32.totalorder %s176, %s192
      %p194 = scmp.eq.s32.totalorder %s28, 0
      %p195 = por %p193, %p194
      %p196 = scmp.le.s32.totalorder 1, %s22
      %p197 = scmp.lt.s32.totalorder %s22, 5
      %p198 = pnand %p196, %p197
      %p199 = pneg %p198
      // Predicated region
      $region9: #{tpu_custom_call.1} parent=5 // pred_check
        _
      $region10: #{tpu_custom_call.1} parent=5 // pred_check_branch
        %201 = sbr.rel (%p198) target = $region12
      $region11: #{tpu_custom_call.1} parent=5 // pred_region
        %s202 = ssub.s32 %s22, 1
        // Predicated region
        $region13: #{tpu_custom_call.1} parent=11 // pred_check
          %p203 = pneg %p83
        $region14: #{tpu_custom_call.1} parent=11 // pred_check_branch
          %205 = sbr.rel (%p203) target = $region16
        $region15: #{tpu_custom_call.1} parent=11 // pred_region
          %s207 = ssub.s32 256, 256
          %208 = vsyncadd [#allocation6], %s207
          %s209 = sshll.u32 [#allocation5], 4
          %s210 = int_to_ptr.vmem [resolvable:$true] %s209
          %215 = dma.hbm_to_vmem [thread:$0]  %s1, 256, %s210, [#allocation6], 64, 64, 4
        $region16: #{tpu_custom_call.1} parent=11 // pred_fallthru
          _
        // Predicated region
        $region17: #{tpu_custom_call.1} parent=11 // pred_check
          %p216 = pneg %p104
        $region18: #{tpu_custom_call.1} parent=11 // pred_check_branch
          %218 = sbr.rel (%p216) target = $region20
        $region19: #{tpu_custom_call.1} parent=11 // pred_region
          _
        $region20: #{tpu_custom_call.1} parent=11 // pred_fallthru
          _
      $region12: #{tpu_custom_call.1} parent=5 // pred_fallthru
        _
      %p219 = scmp.lt.s32.totalorder %s22, 4
      // Predicated region
      $region21: #{tpu_custom_call.1} parent=5 // pred_check
        %p220 = pneg %p219
      $region22: #{tpu_custom_call.1} parent=5 // pred_check_branch
        %222 = sbr.rel (%p220) target = $region24
      $region23: #{tpu_custom_call.1} parent=5 // pred_region
        // Predicated region
        $region25: #{tpu_custom_call.1} parent=23 // pred_check
          %p223 = pneg %p56
        $region26: #{tpu_custom_call.1} parent=23 // pred_check_branch
          %225 = sbr.rel (%p223) target = $region28
        $region27: #{tpu_custom_call.1} parent=23 // pred_region
          %s226 = sand.u32 %s46, 1
          %s227 = scalar_lea.sflag [#allocation3], %s226
          %s228 = sand.u32 %s46, 1
          %s229 = smul.addr %s228, 8
          %s230 = scalar_lea.vmem [#allocation2], %s229
          %s232 = ssub.s32 128, 128
          %233 = vsyncadd %s227, %s232
          %s234 = smul.addr %s29, 2
          %s235 = sadd.s32 %s30, %s234
          %s236 = smul.addr %s235, 128
          %s237 = scalar_lea.hbm %s0, %s236
          %s239 = sshll.u32 %s230, 4
          %s240 = int_to_ptr.vmem [resolvable:$true] %s239
          %242 = dma.hbm_to_vmem [thread:$0]  %s237, 128, %s240, %s227
        $region28: #{tpu_custom_call.1} parent=23 // pred_fallthru
          _
      $region24: #{tpu_custom_call.1} parent=5 // pred_fallthru
        _
      %p243 = scmp.le.s32.totalorder 1, %s22
      %p244 = scmp.lt.s32.totalorder %s22, 5
      %p245 = pnand %p243, %p244
      %p246 = pneg %p245
      // Predicated region
      $region29: #{tpu_custom_call.1} parent=5 // pred_check
        _
      $region30: #{tpu_custom_call.1} parent=5 // pred_check_branch
        %248 = sbr.rel (%p245) target = $region32
      $region31: #{tpu_custom_call.1} parent=5 // pred_region
        %s249 = ssub.s32 %s22, 1
        %s250 = sand.u32 %s49, 1
        %s251 = scalar_lea.sflag [#allocation3], %s250
        %s252 = sand.u32 %s49, 1
        %s253 = smul.addr %s252, 8
        %s254 = scalar_lea.vmem [#allocation2], %s253
        // Predicated region
        $region33: #{tpu_custom_call.1} parent=31 // pred_check
          %p255 = pneg %p62
        $region34: #{tpu_custom_call.1} parent=31 // pred_check_branch
          %257 = sbr.rel (%p255) target = $region36
        $region35: #{tpu_custom_call.1} parent=31 // pred_region
          %258 = dma.done %s251, 128
        $region36: #{tpu_custom_call.1} parent=31 // pred_fallthru
          _
        // Predicated region
        $region37: #{tpu_custom_call.1} parent=31 // pred_check
          %p259 = pneg %p83
        $region38: #{tpu_custom_call.1} parent=31 // pred_check_branch
          %261 = sbr.rel (%p259) target = $region40
        $region39: #{tpu_custom_call.1} parent=31 // pred_region
          %262 = dma.done [#allocation6], 256
        $region40: #{tpu_custom_call.1} parent=31 // pred_fallthru
          _
        %s263 = sand.u32 %s49, 1
        %s264 = scalar_lea.sflag [#allocation3], %s263
        %s265 = sand.u32 %s49, 1
        %s266 = smul.addr %s265, 8
        %s267 = scalar_lea.vmem [#allocation2], %s266
        %p268 = pneg %p62
        %p269 = pneg %p59
        %p270 = pneg %p83
        %p271 = pneg %p80
        %p272 = pneg %p104
        %p273 = pneg %p101
        %p274 = pneg %p132
        %p275 = pneg %p129
        %s276 = sand.u32 %s119, 1
        %s277 = scalar_lea.sflag [#allocation4], %s276
        %s278 = sand.u32 %s119, 1
        %s279 = smul.addr %s278, 4
        %s280 = scalar_lea.vmem [#allocation7], %s279
        %p281 = pneg %p160
        %p282 = pneg %p157
        %s283 = sand.u32 %s27, 1
        %s284 = scalar_lea.sflag [#allocation9], %s283
        %s285 = sand.u32 %s147, 1
        %s286 = smul.addr %s285, 4
        %s287 = scalar_lea.vmem [#allocation8], %s286
        %p288 = pneg %p188
        %p289 = pneg %p185
        %s290 = sand.u32 %s27, 1
        %s291 = scalar_lea.sflag [#allocation9], %s290
        %s292 = sand.u32 %s175, 1
        %s293 = smul.addr %s292, 4
        %s294 = scalar_lea.vmem [#allocation10], %s293
        %v296 = vld [vmem:[%s254] sm:$0xff]
        %v297 = vpack.c.bf16 %v296, %v296
        %v298 = vld [vmem:[#allocation5] sm:$0xf]
        %v299 = vld [vmem:[#allocation5 + $0x4] sm:$0xf]
        %v300 = vld [vmem:[#allocation5 + $0x8] sm:$0xf]
        %v301 = vld [vmem:[#allocation5 + $0xc] sm:$0xf]
        %v302 = vld [vmem:[%s2] sm:$0x1]
        %v304 = vlaneseq
        %v305 = vshrl.u32 %v304, 7
        %v306 = vsub.s32 0, %v305
        %v307 = vrot.slane %v302, %v306
        %v313 = vunpack.c.l.b16 %v298
        %v314 = vunpack.c.l.b16 %v299
        %v315 = vunpack.c.l.b16 %v300
        %v316 = vunpack.c.l.b16 %v301
        %v317 = vpack.c.b16 %v314, %v313
        %v318 = vpack.c.b16 %v316, %v315
        %vm321 = vcmask 261120
        %v323 = vsel %vm321, %v297, 0
        %325 = vmatprep.subr.bf16.mxu0 0
        %326 = vmatpush1.bf16.msra.mxu0 0
        %327 = vmatprep.subr.bf16.mxu0 0
        %328 = vmatpush1.bf16.msra.mxu0 0
        %329 = vmatprep.subr.bf16.mxu0 0
        %330 = vmatpush1.bf16.msra.mxu0 0
        %331 = vmatprep.subr.bf16.mxu0 0
        %332 = vmatpush1.bf16.msra.mxu0 0
        %333 = vmatprep.subr.bf16.mxu0 0
        %334 = vmatpush1.bf16.msra.mxu0 0
        %335 = vmatprep.subr.bf16.mxu0 0
        %336 = vmatpush1.bf16.msra.mxu0 0
        %337 = vmatprep.subr.bf16.mxu0 0
        %338 = vmatpush1.bf16.msra.mxu0 %v318
        %339 = vmatprep.subr.bf16.mxu0 0
        %340 = vmatpush1.bf16.msra.mxu0 %v317
        %341 = vmatprep.subr.bf16.mxu0 0
        %342 = vmatpush2.bf16.msra.mxu0 0
        %343 = vmatprep.subr.bf16.mxu0 0
        %344 = vmatpush2.bf16.msra.mxu0 0
        %345 = vmatprep.subr.bf16.mxu0 0
        %346 = vmatpush2.bf16.msra.mxu0 0
        %347 = vmatprep.subr.bf16.mxu0 0
        %348 = vmatpush2.bf16.msra.mxu0 0
        %349 = vmatprep.subr.bf16.mxu0 0
        %350 = vmatpush2.bf16.msra.mxu0 0
        %351 = vmatprep.subr.bf16.mxu0 0
        %352 = vmatpush2.bf16.msra.mxu0 0
        %353 = vmatprep.subr.bf16.mxu0 0
        %354 = vmatpush2.bf16.msra.mxu0 0
        %355 = vmatprep.subr.bf16.mxu0 0
        %356 = vmatpush2.bf16.msra.mxu0 0
        %357 = vmatprep.mubr.bf16.mxu0 0
        %358 = vmatmul.mubr.bf16.gmra.mxu0 %v323
        %v359 = vpop.f32.mrf.mxu0
        %v360 = vadd.f32 %v307, %v359
        %v361 = vpop.f32.mrf.mxu0
        %v362 = vpop.f32.mrf.mxu0
        %v363 = vpop.f32.mrf.mxu0
        %364 = vdwg.mxu0
        %v365 = vpack.c.bf16 %v360, %v360
        %vm366 = vcmask 257024
        %367 = vst.msk [vmem:[%s280] sm:$0xf] %vm366, %v365
        %v369 = vunpack.c.l.b16 %v365
        %v370 = vpack.c.b16 %v369, %v369
        %371 = vrot.lane.b32.xlu0 %v370, 96
        %v372 = vpop.permute.xlu0 %371
        %374 = vst.msk [vmem:[%s287] sm:$0xf] %vm366, %v372
        %375 = vrot.lane.b32.xlu0 %v370, 64
        %v376 = vpop.permute.xlu0 %375
        %378 = vst.msk [vmem:[%s294] sm:$0xf] %vm366, %v376
        %s379 = sand.u32 %s119, 1
        %s380 = scalar_lea.sflag [#allocation4], %s379
        %s381 = sand.u32 %s119, 1
        %s382 = smul.addr %s381, 4
        %s383 = scalar_lea.vmem [#allocation7], %s382
        %s384 = sand.u32 %s27, 1
        %s385 = scalar_lea.sflag [#allocation9], %s384
        %s386 = sand.u32 %s147, 1
        %s387 = smul.addr %s386, 4
        %s388 = scalar_lea.vmem [#allocation8], %s387
        %s389 = sand.u32 %s27, 1
        %s390 = scalar_lea.sflag [#allocation9], %s389
        %s391 = sand.u32 %s175, 1
        %s392 = smul.addr %s391, 4
        %s393 = scalar_lea.vmem [#allocation10], %s392
        // Predicated region
        $region41: #{tpu_custom_call.1} parent=31 // pred_check
          %p394 = pneg %p129
        $region42: #{tpu_custom_call.1} parent=31 // pred_check_branch
          %396 = sbr.rel (%p394) target = $region44
        $region43: #{tpu_custom_call.1} parent=31 // pred_region
          %s398 = ssub.s32 64, 64
          %399 = vsyncadd %s380, %s398
          %s400 = smul.addr %s31, 2
          %s401 = sadd.s32 %s32, %s400
          %s402 = smul.addr %s401, 64
          %s403 = scalar_lea.hbm %s3, %s402
          %s405 = sshll.u32 %s383, 4
          %s406 = int_to_ptr.vmem [resolvable:$true] %s405
          %408 = dma.vmem_to_hbm [thread:$0]  %s406, 64, %s403, %s380
        $region44: #{tpu_custom_call.1} parent=31 // pred_fallthru
          _
        // Predicated region
        $region45: #{tpu_custom_call.1} parent=31 // pred_check
          %p409 = pneg %p157
        $region46: #{tpu_custom_call.1} parent=31 // pred_check_branch
          %411 = sbr.rel (%p409) target = $region48
        $region47: #{tpu_custom_call.1} parent=31 // pred_region
          %s413 = ssub.s32 64, 64
          %414 = vsyncadd %s385, %s413
          %s415 = smul.addr %s31, 2
          %s416 = sadd.s32 %s32, %s415
          %s417 = smul.addr %s416, 64
          %s418 = scalar_lea.hbm %s4, %s417
          %s420 = sshll.u32 %s388, 4
          %s421 = int_to_ptr.vmem [resolvable:$true] %s420
          %423 = dma.vmem_to_hbm [thread:$0]  %s421, 64, %s418, %s385
        $region48: #{tpu_custom_call.1} parent=31 // pred_fallthru
          _
        // Predicated region
        $region49: #{tpu_custom_call.1} parent=31 // pred_check
          %p424 = pneg %p185
        $region50: #{tpu_custom_call.1} parent=31 // pred_check_branch
          %426 = sbr.rel (%p424) target = $region52
        $region51: #{tpu_custom_call.1} parent=31 // pred_region
          %s428 = ssub.s32 64, 64
          %429 = vsyncadd %s390, %s428
          %s430 = smul.addr %s31, 2
          %s431 = sadd.s32 %s32, %s430
          %s432 = smul.addr %s431, 64
          %s433 = scalar_lea.hbm %s5, %s432
          %s435 = sshll.u32 %s393, 4
          %s436 = int_to_ptr.vmem [resolvable:$true] %s435
          %438 = dma.vmem_to_hbm [thread:$0]  %s436, 64, %s433, %s390
        $region52: #{tpu_custom_call.1} parent=31 // pred_fallthru
          _
      $region32: #{tpu_custom_call.1} parent=5 // pred_fallthru
        _
      %p439 = scmp.le.s32.totalorder 2, %s22
      // Predicated region
      $region53: #{tpu_custom_call.1} parent=5 // pred_check
        %p440 = pneg %p439
      $region54: #{tpu_custom_call.1} parent=5 // pred_check_branch
        %442 = sbr.rel (%p440) target = $region56
      $region55: #{tpu_custom_call.1} parent=5 // pred_region
        %s443 = ssub.s32 %s22, 2
        // Predicated region
        $region57: #{tpu_custom_call.1} parent=55 // pred_check
          %p444 = pneg %p135
        $region58: #{tpu_custom_call.1} parent=55 // pred_check_branch
          %446 = sbr.rel (%p444) target = $region60
        $region59: #{tpu_custom_call.1} parent=55 // pred_region
          %s447 = sand.u32 %s120, 1
          %s448 = scalar_lea.sflag [#allocation4], %s447
          %s449 = sand.u32 %s120, 1
          %s450 = smul.addr %s449, 4
          %s451 = scalar_lea.vmem [#allocation7], %s450
          %452 = dma.done %s448, 64
        $region60: #{tpu_custom_call.1} parent=55 // pred_fallthru
          _
        // Predicated region
        $region61: #{tpu_custom_call.1} parent=55 // pred_check
          %p453 = pneg %p163
        $region62: #{tpu_custom_call.1} parent=55 // pred_check_branch
          %455 = sbr.rel (%p453) target = $region64
        $region63: #{tpu_custom_call.1} parent=55 // pred_region
          %s456 = sand.u32 %s28, 1
          %s457 = scalar_lea.sflag [#allocation9], %s456
          %s458 = sand.u32 %s148, 1
          %s459 = smul.addr %s458, 4
          %s460 = scalar_lea.vmem [#allocation8], %s459
          %461 = dma.done %s457, 64
        $region64: #{tpu_custom_call.1} parent=55 // pred_fallthru
          _
        // Predicated region
        $region65: #{tpu_custom_call.1} parent=55 // pred_check
          %p462 = pneg %p191
        $region66: #{tpu_custom_call.1} parent=55 // pred_check_branch
          %464 = sbr.rel (%p462) target = $region68
        $region67: #{tpu_custom_call.1} parent=55 // pred_region
          %s465 = sand.u32 %s28, 1
          %s466 = scalar_lea.sflag [#allocation9], %s465
          %s467 = sand.u32 %s176, 1
          %s468 = smul.addr %s467, 4
          %s469 = scalar_lea.vmem [#allocation10], %s468
          %470 = dma.done %s466, 64
        $region68: #{tpu_custom_call.1} parent=55 // pred_fallthru
          _
      $region56: #{tpu_custom_call.1} parent=5 // pred_fallthru
        _
    $region6: #{tpu_custom_call.1} parent=1 // loop_footer
      %s26 = sadd.s32 1, %s22
    $region7: #{tpu_custom_call.1} parent=1 // loop_footer_branch
      %21 = sbr.rel target = $region3
    $region8: #{tpu_custom_call.1} parent=1 // loop_exit
      _
    %471 = vsyncpa [#allocation3], 1
    %s472 = scalar_lea.sflag [#allocation3], 1
    %473 = vsyncpa %s472, 1
    %474 = vsyncpa [#allocation6], 1
    %475 = vsyncpa [#allocation4], 1
    %s476 = scalar_lea.sflag [#allocation4], 1
    %477 = vsyncpa %s476, 1
    %478 = vsyncpa [#allocation9], 1
    %s479 = scalar_lea.sflag [#allocation9], 1
    %480 = vsyncpa %s479, 1

</llo_original>
